<compile_context>
chip_gen: v7x
topology: tpu7x:2x2x1
jax: 0.10.0
libtpu: 0.0.40
codegen_flags: <defaults>
</compile_context>

<pallas_src>
import jax
import jax.numpy as jnp
from jax.experimental import pallas as pl
from jax.experimental.pallas import tpu as pltpu


def _round_up(a, b):
    return (a + b - 1) // b * b


def gaussian_kernel(x_ref, wcat_ref, noise_ref, mu_ref, var_ref, z_ref):
    x = x_ref[...]                                           # (bt, in_dim)

    # One fused MXU matmul: y = x @ [Wmu^T | 0 | Wvar^T | 0]  -> (bt, 2*zp)
    y = jnp.dot(x, wcat_ref[...], preferred_element_type=jnp.float32)
    zp = y.shape[-1] // 2
    z_dim = mu_ref.shape[-1]

    mu = y[:, :z_dim]                                        # starts at lane 0
    p = y[:, zp:zp + z_dim]                                  # starts on a 128-lane boundary
    # softplus, numerically stable: log(1 + exp(p)) == logaddexp(p, 0)
    var = jnp.logaddexp(p, jnp.float32(0.0))

    # reparameterize: z = mu + noise * sqrt(var + 1e-10)
    std = jnp.sqrt(var + jnp.float32(1e-10))
    z = mu + noise_ref[...] * std

    mu_ref[...] = mu.astype(mu_ref.dtype)
    var_ref[...] = var.astype(var_ref.dtype)
    z_ref[...] = z.astype(z_ref.dtype)


def build_gaussian_weight(w_mu, w_var):
    """Param-init-time prep (done ONCE, not per call): transpose both Linear
    weights, zero-pad each half to a multiple of 128 lanes, concatenate.
    Returns (in_dim, 2*zp) f32 with zp = round_up(z_dim, 128)."""
    z_dim, in_dim = w_mu.shape
    zp = _round_up(z_dim, 128)
    w_cat = jnp.zeros((in_dim, 2 * zp), jnp.float32)
    w_cat = w_cat.at[:, :z_dim].set(w_mu.T.astype(jnp.float32))
    w_cat = w_cat.at[:, zp:zp + z_dim].set(w_var.T.astype(jnp.float32))
    return w_cat


def gaussian_forward(x, w_cat, noise):
    """x: (B, in_dim) f32.  w_cat: (in_dim, 2*zp) f32 from build_gaussian_weight.
    noise: (B, z_dim) f32 standard-normal (torch.randn_like equivalent).
    Returns (mu, var, z), each (B, z_dim) f32."""
    B, in_dim = x.shape
    z_dim = noise.shape[-1]
    two_zp = w_cat.shape[1]
    zp = two_zp // 2
    assert noise.shape == (B, z_dim)
    assert zp >= z_dim and zp % 128 == 0

    # --- batch tile: ~2 MiB of x per tile, VMEM-capped, multiple of 8 ---
    target_x_bytes = 2 << 20
    bt = max(8, (target_x_bytes // (4 * in_dim)) // 8 * 8)

    vmem_budget = 12 << 20                                   # safe on v5e/v6e/v7x
    w_bytes = 2 * in_dim * two_zp * 4                        # double-buffered weight
    # double-buffered x / noise / 3 outputs, plus the (bt, 2*zp) matmul temp
    per_row = 4 * (2 * in_dim + 8 * z_dim + 2 * zp)
    vmem_bt = max(8, (max(vmem_budget - w_bytes, 0) // max(per_row, 1)) // 8 * 8)
    bt = min(bt, vmem_bt, _round_up(B, 8))

    # Pad batch so every tile is full (keeps pipelining / megacore sharding and
    # avoids reading undefined padding rows).
    Bp = _round_up(B, bt)
    if Bp != B:
        pad = Bp - B
        x = jnp.pad(x, ((0, pad), (0, 0)))
        noise = jnp.pad(noise, ((0, pad), (0, 0)))

    grid = (Bp // bt,)
    vmem_est = w_bytes + bt * per_row
    vmem_limit = int(min(64 << 20, max(4 << 20, 2 * vmem_est)))

    out_shapes = (
        jax.ShapeDtypeStruct((Bp, z_dim), jnp.float32),
        jax.ShapeDtypeStruct((Bp, z_dim), jnp.float32),
        jax.ShapeDtypeStruct((Bp, z_dim), jnp.float32),
    )

    mu, var, z = pl.pallas_call(
        gaussian_kernel,
        out_shape=out_shapes,
        grid_spec=pltpu.PrefetchScalarGridSpec(
            num_scalar_prefetch=0,
            grid=grid,
            in_specs=[
                pl.BlockSpec((bt, in_dim), lambda i: (i, 0)),       # x
                pl.BlockSpec((in_dim, two_zp), lambda i: (0, 0)),   # W_cat (replicated)
                pl.BlockSpec((bt, z_dim), lambda i: (i, 0)),        # noise
            ],
            out_specs=(
                pl.BlockSpec((bt, z_dim), lambda i: (i, 0)),        # mu
                pl.BlockSpec((bt, z_dim), lambda i: (i, 0)),        # var
                pl.BlockSpec((bt, z_dim), lambda i: (i, 0)),        # z
            ),
        ),
        compiler_params=pltpu.CompilerParams(
            dimension_semantics=("parallel",),                      # megacore on v7x
            vmem_limit_bytes=vmem_limit,
        ),
    )(x, w_cat, noise)

    if Bp != B:
        mu, var, z = mu[:B], var[:B], z[:B]
    return mu, var, z


if __name__ == "__main__":
    B, in_dim, z_dim = 8, 32, 16

    key = jax.random.PRNGKey(0)
    kx, kmu, kvar, kn = jax.random.split(key, 4)

    # Deterministic parameter init mimicking torch.nn.Linear default
    # (uniform in [-1/sqrt(in_dim), 1/sqrt(in_dim)]), weight shape (z_dim, in_dim).
    bound = 1.0 / jnp.sqrt(jnp.float32(in_dim))
    w_mu = jax.random.uniform(kmu, (z_dim, in_dim), jnp.float32, -bound, bound)
    w_var = jax.random.uniform(kvar, (z_dim, in_dim), jnp.float32, -bound, bound)

    # Param-init-time weight prep: transpose + lane-pad + concat (done once).
    w_cat = build_gaussian_weight(w_mu, w_var)

    x = jax.random.normal(kx, (B, in_dim), jnp.float32)
    noise = jax.random.normal(kn, (B, z_dim), jnp.float32)   # torch.randn_like(std)

    mu, var, z = gaussian_forward(x, w_cat, noise)
    jax.block_until_ready((mu, var, z))

    # Pure-JAX reference check.
    mu_ref = x @ w_mu.T
    var_ref = jax.nn.softplus(x @ w_var.T)
    z_ref = mu_ref + noise * jnp.sqrt(var_ref + 1e-10)
    assert jnp.allclose(mu, mu_ref, atol=1e-5, rtol=1e-5)
    assert jnp.allclose(var, var_ref, atol=1e-5, rtol=1e-5)
    assert jnp.allclose(z, z_ref, atol=1e-5, rtol=1e-5)

    print("KERNEL_OK")
</pallas_src>

<mosaic_0001>
module attributes {stable_mosaic.version = 11 : i64} {
  func.func @gaussian_kernel(%arg0: i32, %arg1: memref<8x32xf32, #tpu.memory_space<vmem>>, %arg2: memref<32x256xf32, #tpu.memory_space<vmem>>, %arg3: memref<8x16xf32, #tpu.memory_space<vmem>>, %arg4: memref<8x16xf32, #tpu.memory_space<vmem>>, %arg5: memref<8x16xf32, #tpu.memory_space<vmem>>, %arg6: memref<8x16xf32, #tpu.memory_space<vmem>>) attributes {dimension_semantics = [#tpu.dimension_semantics<parallel>], iteration_bounds = array<i64: 1>, scalar_prefetch = 0 : i64, scratch_operands = 0 : i64, tpu.core_type = #tpu.core_type<tc>, window_params = [{transform_indices = @transform_0, window_bounds = array<i64: 8, 32>}, {pipeline_mode = #tpu.pipeline_mode<synchronous>, transform_indices = @transform_1, window_bounds = array<i64: 32, 256>}, {transform_indices = @transform_2, window_bounds = array<i64: 8, 16>}, {transform_indices = @transform_3, window_bounds = array<i64: 8, 16>}, {transform_indices = @transform_4, window_bounds = array<i64: 8, 16>}, {transform_indices = @transform_5, window_bounds = array<i64: 8, 16>}]} {
    %c0 = arith.constant 0 : index
    %c0_0 = arith.constant 0 : index
    %0 = vector.load %arg1[%c0, %c0_0] : memref<8x32xf32, #tpu.memory_space<vmem>>, vector<8x32xf32>
    %c0_1 = arith.constant 0 : index
    %c0_2 = arith.constant 0 : index
    %1 = vector.load %arg2[%c0_1, %c0_2] : memref<32x256xf32, #tpu.memory_space<vmem>>, vector<32x256xf32>
    %cst = arith.constant dense<0.000000e+00> : vector<8x256xf32>
    %2 = tpu.matmul %0, %1, %cst {dimension_numbers = #tpu.dot_dimension_numbers<[1], [0], [0], [1], [0, 0, 1, 1], [], []>} : vector<8x32xf32>, vector<32x256xf32>, vector<8x256xf32> -> vector<8x256xf32>
    %3 = vector.extract_strided_slice %2 {offsets = [0, 0], sizes = [8, 16], strides = [1, 1]} : vector<8x256xf32> to vector<8x16xf32>
    %4 = vector.extract_strided_slice %2 {offsets = [0, 128], sizes = [8, 16], strides = [1, 1]} : vector<8x256xf32> to vector<8x16xf32>
    %cst_3 = arith.constant 0.000000e+00 : f32
    %5 = vector.broadcast %cst_3 : f32 to vector<8x16xf32>
    %6 = arith.maximumf %4, %5 : vector<8x16xf32>
    %7 = vector.broadcast %cst_3 : f32 to vector<8x16xf32>
    %8 = arith.subf %4, %7 : vector<8x16xf32>
    %9 = arith.cmpf one, %8, %8 : vector<8x16xf32>
    %10 = vector.broadcast %cst_3 : f32 to vector<8x16xf32>
    %11 = arith.addf %4, %10 : vector<8x16xf32>
    %12 = math.absf %8 : vector<8x16xf32>
    %cst_4 = arith.constant 0.000000e+00 : f32
    %13 = vector.broadcast %cst_4 : f32 to vector<8x16xf32>
    %14 = arith.subf %13, %12 : vector<8x16xf32>
    %15 = math.exp %14 : vector<8x16xf32>
    %16 = math.log1p %15 : vector<8x16xf32>
    %17 = arith.addf %6, %16 : vector<8x16xf32>
    %18 = arith.select %9, %11, %17 : vector<8x16xi1>, vector<8x16xf32>
    %cst_5 = arith.constant 1.000000e-10 : f32
    %19 = vector.broadcast %cst_5 : f32 to vector<8x16xf32>
    %20 = arith.addf %18, %19 : vector<8x16xf32>
    %21 = math.sqrt %20 : vector<8x16xf32>
    %c0_6 = arith.constant 0 : index
    %c0_7 = arith.constant 0 : index
    %22 = vector.load %arg3[%c0_6, %c0_7] : memref<8x16xf32, #tpu.memory_space<vmem>>, vector<8x16xf32>
    %23 = arith.mulf %22, %21 : vector<8x16xf32>
    %24 = arith.addf %3, %23 : vector<8x16xf32>
    %c0_8 = arith.constant 0 : index
    %c0_9 = arith.constant 0 : index
    %25 = vector.load %arg4[%c0_8, %c0_9] : memref<8x16xf32, #tpu.memory_space<vmem>>, vector<8x16xf32>
    tpu.vector_store %arg4[%c0_8, %c0_9], %3 {strides = array<i32>} : memref<8x16xf32, #tpu.memory_space<vmem>>, vector<8x16xf32>,
    %c0_10 = arith.constant 0 : index
    %c0_11 = arith.constant 0 : index
    %26 = vector.load %arg5[%c0_10, %c0_11] : memref<8x16xf32, #tpu.memory_space<vmem>>, vector<8x16xf32>
    tpu.vector_store %arg5[%c0_10, %c0_11], %18 {strides = array<i32>} : memref<8x16xf32, #tpu.memory_space<vmem>>, vector<8x16xf32>,
    %c0_12 = arith.constant 0 : index
    %c0_13 = arith.constant 0 : index
    %27 = vector.load %arg6[%c0_12, %c0_13] : memref<8x16xf32, #tpu.memory_space<vmem>>, vector<8x16xf32>
    tpu.vector_store %arg6[%c0_12, %c0_13], %24 {strides = array<i32>} : memref<8x16xf32, #tpu.memory_space<vmem>>, vector<8x16xf32>,
    return
  }
  func.func @transform_0(%arg0: i32) -> (i32, i32) {
    %c0_i32 = arith.constant 0 : i32
    %c0_i32_0 = arith.constant 0 : i32
    return %arg0, %c0_i32 : i32, i32
  }
  func.func @transform_1(%arg0: i32) -> (i32, i32) {
    %c0_i32 = arith.constant 0 : i32
    %c0_i32_0 = arith.constant 0 : i32
    %c0_i32_1 = arith.constant 0 : i32
    return %c0_i32, %c0_i32_0 : i32, i32
  }
  func.func @transform_2(%arg0: i32) -> (i32, i32) {
    %c0_i32 = arith.constant 0 : i32
    %c0_i32_0 = arith.constant 0 : i32
    return %arg0, %c0_i32 : i32, i32
  }
  func.func @transform_3(%arg0: i32) -> (i32, i32) {
    %c0_i32 = arith.constant 0 : i32
    %c0_i32_0 = arith.constant 0 : i32
    return %arg0, %c0_i32 : i32, i32
  }
  func.func @transform_4(%arg0: i32) -> (i32, i32) {
    %c0_i32 = arith.constant 0 : i32
    %c0_i32_0 = arith.constant 0 : i32
    return %arg0, %c0_i32 : i32, i32
  }
  func.func @transform_5(%arg0: i32) -> (i32, i32) {
    %c0_i32 = arith.constant 0 : i32
    %c0_i32_0 = arith.constant 0 : i32
    return %arg0, %c0_i32 : i32, i32
  }
}

</mosaic_0001>

<llo_original>
// kernel: tpu_custom_call.1
$region0: #{tpu_custom_call.1}
  #allocation0 [shape = 'u32[]', space=smem, size = 0x4, offset = 0x4, fixed_abs, tag = 'smem constant byte address 0x4 - core index']
  #allocation1 [shape = 'u32[144,128]{1,0:T(1,128)}', space=vmem, size = 0x12000, scoped, tag = 'internal scratch']
  %s0 = inlined_call_operand.hbm [shape: f32[8,32], index: 0, kind: input, shape index: {}]
  %s1 = inlined_call_operand.hbm [shape: f32[32,256], index: 1, kind: input, shape index: {}]
  %s2 = inlined_call_operand.hbm [shape: f32[8,16], index: 2, kind: input, shape index: {}]
  %s3 = inlined_call_operand.hbm [shape: f32[8,16], index: 3, kind: output, shape index: {0}]
  %s4 = inlined_call_operand.hbm [shape: f32[8,16], index: 4, kind: output, shape index: {1}]
  %s5 = inlined_call_operand.hbm [shape: f32[8,16], index: 5, kind: output, shape index: {2}]
  %6 = xla_tuple %s3, %s4, %s5
  %s7 = sld [smem:[#allocation0]]
  $region50: #{tpu_custom_call.1} parent=0
    _
  %s9 = ssub.s32 1, %s7
  %s10 = scalar_select 0, %s9, %s7
  $region1: #{tpu_custom_call.1} parent=0
    #allocation2 [shape = 'u8[4096]{0}', space=vmem, size = 0x1000, scoped, tag = 'input window, operand 0, single buffered']
    #allocation3 [shape = 's32[1]{0}', space=sflag, size = 0x4, scoped, tag = 'scoped memory for tpu_custom_call.1']
    #allocation4 [shape = 's32[1]{0}', space=sflag, size = 0x4, scoped, tag = 'scoped memory for tpu_custom_call.1']
    #allocation5 [shape = 'u8[32768]{0}', space=vmem, size = 0x8000, scoped, tag = 'input window, operand 1, single buffered']
    #allocation6 [shape = 's32[1]{0}', space=sflag, size = 0x4, scoped, tag = 'scoped memory for tpu_custom_call.1']
    #allocation7 [shape = 'u8[4096]{0}', space=vmem, size = 0x1000, scoped, tag = 'input window, operand 2, single buffered']
    #allocation8 [shape = 'u8[4096]{0}', space=vmem, size = 0x1000, scoped, tag = 'output window, operand 0, single buffered']
    #allocation9 [shape = 'u8[4096]{0}', space=vmem, size = 0x1000, scoped, tag = 'output window, operand 1, single buffered']
    #allocation10 [shape = 's32[1]{0}', space=sflag, size = 0x4, scoped, tag = 'scoped memory for tpu_custom_call.1']
    #allocation11 [shape = 'u8[4096]{0}', space=vmem, size = 0x1000, scoped, tag = 'output window, operand 2, single buffered']
    %11 = vsyncpa [#allocation3], 0
    %12 = vsyncpa [#allocation6], 0
    %13 = vsyncpa [#allocation4], 0
    %14 = vsyncpa [#allocation10], 0
    // Predicated region
    $region2: #{tpu_custom_call.1} parent=1 // pred_check
      _
    $region3: #{tpu_custom_call.1} parent=1 // pred_check_branch
      %16 = sbr.rel (0) target = $region5
    $region4: #{tpu_custom_call.1} parent=1 // pred_region
      %s18 = ssub.s32 128, 128
      %19 = vsyncadd [#allocation3], %s18
      %s21 = sshll.u32 [#allocation2], 4
      %s22 = int_to_ptr.vmem [resolvable:$true] %s21
      %24 = dma.hbm_to_vmem [thread:$0]  %s0, 128, %s22, [#allocation3]
    $region5: #{tpu_custom_call.1} parent=1 // pred_fallthru
      _
    // Predicated region
    $region6: #{tpu_custom_call.1} parent=1 // pred_check
      _
    $region7: #{tpu_custom_call.1} parent=1 // pred_check_branch
      %26 = sbr.rel (0) target = $region9
    $region8: #{tpu_custom_call.1} parent=1 // pred_region
      %s28 = ssub.s32 1024, 1024
      %29 = vsyncadd [#allocation6], %s28
      %s30 = sshll.u32 [#allocation5], 4
      %s31 = int_to_ptr.vmem [resolvable:$true] %s30
      %36 = dma.hbm_to_vmem [thread:$0]  %s1, 1024, %s31, [#allocation6], 256, 256, 16
    $region9: #{tpu_custom_call.1} parent=1 // pred_fallthru
      _
    // Predicated region
    $region10: #{tpu_custom_call.1} parent=1 // pred_check
      _
    $region11: #{tpu_custom_call.1} parent=1 // pred_check_branch
      %38 = sbr.rel (0) target = $region13
    $region12: #{tpu_custom_call.1} parent=1 // pred_region
      %s40 = ssub.s32 128, 128
      %41 = vsyncadd [#allocation6], %s40
      %s43 = sshll.u32 [#allocation7], 4
      %s44 = int_to_ptr.vmem [resolvable:$true] %s43
      %46 = dma.hbm_to_vmem [thread:$0]  %s2, 128, %s44, [#allocation6]
    $region13: #{tpu_custom_call.1} parent=1 // pred_fallthru
      _
    // Predicated region
    $region14: #{tpu_custom_call.1} parent=1 // pred_check
      _
    $region15: #{tpu_custom_call.1} parent=1 // pred_check_branch
      %48 = sbr.rel (0) target = $region17
    $region16: #{tpu_custom_call.1} parent=1 // pred_region
      %49 = dma.done [#allocation3], 128
    $region17: #{tpu_custom_call.1} parent=1 // pred_fallthru
      _
    // Predicated region
    $region18: #{tpu_custom_call.1} parent=1 // pred_check
      _
    $region19: #{tpu_custom_call.1} parent=1 // pred_check_branch
      %51 = sbr.rel (0) target = $region21
    $region20: #{tpu_custom_call.1} parent=1 // pred_region
      %52 = dma.done [#allocation6], 1024
    $region21: #{tpu_custom_call.1} parent=1 // pred_fallthru
      _
    // Predicated region
    $region22: #{tpu_custom_call.1} parent=1 // pred_check
      _
    $region23: #{tpu_custom_call.1} parent=1 // pred_check_branch
      %54 = sbr.rel (0) target = $region25
    $region24: #{tpu_custom_call.1} parent=1 // pred_region
      %55 = dma.done [#allocation6], 128
    $region25: #{tpu_custom_call.1} parent=1 // pred_fallthru
      _
    %v56 = vld [vmem:[#allocation2] sm:$0xff]
    %v57 = vld [vmem:[#allocation5] sm:$0xff]
    %v58 = vld [vmem:[#allocation5 + $0x8] sm:$0xff]
    %v59 = vld [vmem:[#allocation5 + $0x10] sm:$0xff]
    %v60 = vld [vmem:[#allocation5 + $0x18] sm:$0xff]
    %v61 = vld [vmem:[#allocation5 + $0x20] sm:$0xff]
    %v62 = vld [vmem:[#allocation5 + $0x28] sm:$0xff]
    %v63 = vld [vmem:[#allocation5 + $0x30] sm:$0xff]
    %v64 = vld [vmem:[#allocation5 + $0x38] sm:$0xff]
    %vm65 = vcmask 261120
    %v67 = vsel %vm65, %v56, 0
    %69 = vmatprep.subr.mxu0 %v58
    %70 = vmatpush1.msra.mxu0 %v57
    %71 = vmatprep.subr.mxu0 %v60
    %72 = vmatpush1.msra.mxu0 %v59
    %73 = vmatprep.subr.mxu0 %v62
    %74 = vmatpush1.msra.mxu0 %v61
    %75 = vmatprep.subr.mxu0 %v64
    %76 = vmatpush1.msra.mxu0 %v63
    %77 = vmatprep.subr.mxu0 0.0
    %78 = vmatpush1.msra.mxu0 0.0
    %79 = vmatprep.subr.mxu0 0.0
    %80 = vmatpush1.msra.mxu0 0.0
    %81 = vmatprep.subr.mxu0 0.0
    %82 = vmatpush1.msra.mxu0 0.0
    %83 = vmatprep.subr.mxu0 0.0
    %84 = vmatpush1.msra.mxu0 0.0
    %85 = vmatprep.subr.mxu0 0.0
    %86 = vmatpush1.msra.mxu0 0.0
    %87 = vmatprep.subr.mxu0 0.0
    %88 = vmatpush1.msra.mxu0 0.0
    %89 = vmatprep.subr.mxu0 0.0
    %90 = vmatpush1.msra.mxu0 0.0
    %91 = vmatprep.subr.mxu0 0.0
    %92 = vmatpush1.msra.mxu0 0.0
    %93 = vmatprep.subr.mxu0 0.0
    %94 = vmatpush1.msra.mxu0 0.0
    %95 = vmatprep.subr.mxu0 0.0
    %96 = vmatpush1.msra.mxu0 0.0
    %97 = vmatprep.subr.mxu0 0.0
    %98 = vmatpush1.msra.mxu0 0.0
    %99 = vmatprep.subr.mxu0 0.0
    %100 = vmatpush1.msra.mxu0 0.0
    %101 = vmatprep.subr.mxu0 0.0
    %102 = vmatpush1.msra.mxu0 0.0
    %103 = vmatprep.subr.mxu0 0.0
    %104 = vmatpush1.msra.mxu0 0.0
    %105 = vmatprep.subr.mxu0 0.0
    %106 = vmatpush1.msra.mxu0 0.0
    %107 = vmatprep.subr.mxu0 0.0
    %108 = vmatpush1.msra.mxu0 0.0
    %109 = vmatprep.subr.mxu0 0.0
    %110 = vmatpush1.msra.mxu0 0.0
    %111 = vmatprep.subr.mxu0 0.0
    %112 = vmatpush1.msra.mxu0 0.0
    %113 = vmatprep.subr.mxu0 0.0
    %114 = vmatpush1.msra.mxu0 0.0
    %115 = vmatprep.subr.mxu0 0.0
    %116 = vmatpush1.msra.mxu0 0.0
    %117 = vmatprep.subr.mxu0 0.0
    %118 = vmatpush1.msra.mxu0 0.0
    %119 = vmatprep.subr.mxu0 0.0
    %120 = vmatpush1.msra.mxu0 0.0
    %121 = vmatprep.subr.mxu0 0.0
    %122 = vmatpush1.msra.mxu0 0.0
    %123 = vmatprep.subr.mxu0 0.0
    %124 = vmatpush1.msra.mxu0 0.0
    %125 = vmatprep.subr.mxu0 0.0
    %126 = vmatpush1.msra.mxu0 0.0
    %127 = vmatprep.subr.mxu0 0.0
    %128 = vmatpush1.msra.mxu0 0.0
    %129 = vmatprep.subr.mxu0 0.0
    %130 = vmatpush1.msra.mxu0 0.0
    %131 = vmatprep.subr.mxu0 0.0
    %132 = vmatpush1.msra.mxu0 0.0
    %133 = vmatprep.mubr.f32.mxu0 0.0
    %134 = vmatmul.mubr.f32.gmra.mrb[0].mxu0 %v67
    %v135 = vpop.f32.mrb[0].mxu0
    %v136 = vadd.f32 0.0, %v135
    %v137 = vpop.f32.mrb[0].mxu0
    %v138 = vadd.f32 0.0, %v137
    %139 = vdwg.mxu0
    %v140 = vmax.f32 %v138, 0.0
    %vm141 = vcmp.ne.f32.partialorder %v138, %v138
    %v142 = vadd.f32 %v138, 0.0
    %v143 = vand.u32 2147483647, %v138
    %v144 = vsub.f32 0.0, %v143
    %v145 = vmul.f32 %v144, 1.442695
    %v146 = vpow.pop %v145
    %v147 = vadd.f32 %v146, 1.0
    %v148 = vlog2.pop %v147
    %v149 = vmul.f32 %v148, 0.6931472
    %v150 = vmul.f32 -0.5, %v146
    %v151 = vadd.f32 %v150, 1.0
    %v152 = vmul.f32 %v151, %v146
    %v153 = vand.u32 2147483647, %v146
    %vm154 = vcmp.lt.f32.partialorder %v153, 0.0004427343
    %v155 = vsel %vm154, %v152, %v149
    %v156 = vadd.f32 %v140, %v155
    %v157 = vsel %vm141, %v142, %v156
    %v158 = vadd.f32 %v157, 1e-10
    %v159 = vrsqrt.pop %v158
    %v160 = vmul.f32 %v158, %v159
    %vm161 = vcmp.eq.f32.partialorder %v158, inf
    %v162 = vsel %vm161, %v158, %v160
    %vm163 = vcmp.eq.f32.partialorder %v158, 0.0
    %v164 = vand.u32 %v158, 2147483648
    %v165 = vsel %vm163, %v164, %v162
    %v166 = vld [vmem:[#allocation7] sm:$0xff]
    %v167 = vmul.f32 %v166, %v165
    %v168 = vadd.f32 %v136, %v167
    %vm169 = vcmask 130048
    %170 = vst.msk [vmem:[#allocation8] sm:$0xff] %vm169, %v136
    %171 = vst.msk [vmem:[#allocation9] sm:$0xff] %vm169, %v157
    %172 = vst.msk [vmem:[#allocation11] sm:$0xff] %vm169, %v168
    // Predicated region
    $region26: #{tpu_custom_call.1} parent=1 // pred_check
      _
    $region27: #{tpu_custom_call.1} parent=1 // pred_check_branch
      %174 = sbr.rel (0) target = $region29
    $region28: #{tpu_custom_call.1} parent=1 // pred_region
      %s176 = ssub.s32 128, 128
      %177 = vsyncadd [#allocation4], %s176
      %s179 = sshll.u32 [#allocation8], 4
      %s180 = int_to_ptr.vmem [resolvable:$true] %s179
      %182 = dma.vmem_to_hbm [thread:$0]  %s180, 128, %s3, [#allocation4]
    $region29: #{tpu_custom_call.1} parent=1 // pred_fallthru
      _
    // Predicated region
    $region30: #{tpu_custom_call.1} parent=1 // pred_check
      _
    $region31: #{tpu_custom_call.1} parent=1 // pred_check_branch
      %184 = sbr.rel (0) target = $region33
    $region32: #{tpu_custom_call.1} parent=1 // pred_region
      %s186 = ssub.s32 128, 128
      %187 = vsyncadd [#allocation10], %s186
      %s189 = sshll.u32 [#allocation9], 4
      %s190 = int_to_ptr.vmem [resolvable:$true] %s189
      %192 = dma.vmem_to_hbm [thread:$0]  %s190, 128, %s4, [#allocation10]
    $region33: #{tpu_custom_call.1} parent=1 // pred_fallthru
      _
    // Predicated region
    $region34: #{tpu_custom_call.1} parent=1 // pred_check
      _
    $region35: #{tpu_custom_call.1} parent=1 // pred_check_branch
      %194 = sbr.rel (0) target = $region37
    $region36: #{tpu_custom_call.1} parent=1 // pred_region
      %s196 = ssub.s32 128, 128
      %197 = vsyncadd [#allocation10], %s196
      %s199 = sshll.u32 [#allocation11], 4
      %s200 = int_to_ptr.vmem [resolvable:$true] %s199
      %202 = dma.vmem_to_hbm [thread:$0]  %s200, 128, %s5, [#allocation10]
    $region37: #{tpu_custom_call.1} parent=1 // pred_fallthru
      _
    // Predicated region
    $region38: #{tpu_custom_call.1} parent=1 // pred_check
      _
    $region39: #{tpu_custom_call.1} parent=1 // pred_check_branch
      %204 = sbr.rel (0) target = $region41
    $region40: #{tpu_custom_call.1} parent=1 // pred_region
      %205 = dma.done [#allocation4], 128
    $region41: #{tpu_custom_call.1} parent=1 // pred_fallthru
      _
    // Predicated region
    $region42: #{tpu_custom_call.1} parent=1 // pred_check
      _
    $region43: #{tpu_custom_call.1} parent=1 // pred_check_branch
      %207 = sbr.rel (0) target = $region45
    $region44: #{tpu_custom_call.1} parent=1 // pred_region
      %208 = dma.done [#allocation10], 128
    $region45: #{tpu_custom_call.1} parent=1 // pred_fallthru
      _
    // Predicated region
    $region46: #{tpu_custom_call.1} parent=1 // pred_check
      _
    $region47: #{tpu_custom_call.1} parent=1 // pred_check_branch
      %210 = sbr.rel (0) target = $region49
    $region48: #{tpu_custom_call.1} parent=1 // pred_region
      %211 = dma.done [#allocation10], 128
    $region49: #{tpu_custom_call.1} parent=1 // pred_fallthru
      _
    %212 = vsyncpa [#allocation3], 1
    %213 = vsyncpa [#allocation6], 1
    %214 = vsyncpa [#allocation4], 1
    %215 = vsyncpa [#allocation10], 1

</llo_original>
